<compile_context>
chip_gen: v7x
topology: tpu7x:2x2x1
jax: 0.10.0
libtpu: 0.0.40
codegen_flags: <defaults>
</compile_context>

<pallas_src>
import jax
import jax.numpy as jnp
from jax.experimental import pallas as pl
from jax.experimental.pallas import tpu as pltpu


def mlp_kernel(x_ref, w1_ref, b1_ref, w2_ref, b2_ref, w3_ref, b3_ref, o_ref):
    cd = w1_ref.dtype
    # Cast x to the MXU compute dtype in-kernel (no wrapper HBM pass).
    x = x_ref[...].astype(cd)

    # layer1 + ReLU (MXU matmul, f32 accumulate; bias/act in f32 on the VPU)
    h1 = jnp.dot(x, w1_ref[...], preferred_element_type=jnp.float32)
    a1 = jnp.maximum(h1 + b1_ref[...], 0.0)

    # layer2 + ReLU
    h2 = jnp.dot(a1.astype(cd), w2_ref[...], preferred_element_type=jnp.float32)
    a2 = jnp.maximum(h2 + b2_ref[...], 0.0)

    # layer3 (logits over the lane-dense, class-padded head)
    logits = jnp.dot(a2.astype(cd), w3_ref[...],
                     preferred_element_type=jnp.float32) + b3_ref[...]

    # softmax over the class axis.  Padded classes carry a -1e30 bias so their
    # exp underflows to exactly 0 and contributes nothing to the denominator.
    m = jnp.max(logits, axis=-1, keepdims=True)
    e = jnp.exp(logits - m)
    s = jnp.sum(e, axis=-1, keepdims=True)
    o_ref[...] = (e / s).astype(o_ref.dtype)


def _round_up(v, m):
    return ((v + m - 1) // m) * m


def prepare_params(w1, b1, w2, b2, w3, b3, *, use_bf16=True, class_pad=128):
    """One-time parameter preparation (do NOT call per forward pass).

    Casts weights to the MXU compute dtype once and pads the class head to a
    lane-dense width (multiple of 128): W3 columns zero-padded, b3 padded with
    -1e30 so softmax mass cannot leak into the padded classes.
    """
    cd = jnp.bfloat16 if use_bf16 else jnp.float32
    F, H = w1.shape
    C = w3.shape[1]
    Cp = _round_up(max(C, class_pad), 128)

    w3p = jnp.zeros((H, Cp), jnp.float32).at[:, :C].set(w3.astype(jnp.float32))
    b3p = jnp.full((1, Cp), -1e30, jnp.float32).at[0, :C].set(
        b3.reshape(-1).astype(jnp.float32))

    return (w1.astype(cd),
            b1.reshape(1, H).astype(jnp.float32),
            w2.astype(cd),
            b2.reshape(1, H).astype(jnp.float32),
            w3p.astype(cd),
            b3p,
            C)


def ml_model_forward(x, params, *, tile_b=512):
    w1, b1, w2, b2, w3, b3, num_classes = params
    B, F = x.shape
    H = w1.shape[1]
    Cp = w3.shape[1]

    # Batch tiling: single grid step for small batches; big tiles otherwise.
    tb = min(tile_b, _round_up(B, 8))
    b_pad = _round_up(B, tb)
    x_in = x if b_pad == B else jnp.pad(x, ((0, b_pad - B), (0, 0)))

    grid = (b_pad // tb,)

    cost = pl.CostEstimate(
        flops=2 * b_pad * (F * H + H * H + H * Cp),
        transcendentals=b_pad * Cp,
        bytes_accessed=(x_in.size * x_in.dtype.itemsize
                        + w1.size * w1.dtype.itemsize
                        + w2.size * w2.dtype.itemsize
                        + w3.size * w3.dtype.itemsize
                        + 4 * (H + H + Cp)
                        + b_pad * Cp * 4),
    )

    out = pl.pallas_call(
        mlp_kernel,
        out_shape=jax.ShapeDtypeStruct((b_pad, Cp), jnp.float32),
        grid_spec=pl.GridSpec(
            grid=grid,
            in_specs=[
                pl.BlockSpec((tb, F), lambda i: (i, 0)),   # x tile (pipelined)
                pl.BlockSpec((F, H), lambda i: (0, 0)),    # W1 (VMEM-resident)
                pl.BlockSpec((1, H), lambda i: (0, 0)),    # b1
                pl.BlockSpec((H, H), lambda i: (0, 0)),    # W2
                pl.BlockSpec((1, H), lambda i: (0, 0)),    # b2
                pl.BlockSpec((H, Cp), lambda i: (0, 0)),   # W3 (class-padded)
                pl.BlockSpec((1, Cp), lambda i: (0, 0)),   # b3 (-1e30 on pad)
            ],
            out_specs=pl.BlockSpec((tb, Cp), lambda i: (i, 0)),
        ),
        compiler_params=pltpu.CompilerParams(
            dimension_semantics=("parallel",)),
        cost_estimate=cost,
    )(x_in, w1, b1, w2, b2, w3, b3)

    # Slice back to the real batch and the 10 real classes.
    return out[:B, :num_classes]


def _init_linear(key, fan_in, fan_out):
    # PyTorch nn.Linear default: U(-1/sqrt(fan_in), 1/sqrt(fan_in))
    kw, kb = jax.random.split(key)
    bound = 1.0 / jnp.sqrt(fan_in)
    w = jax.random.uniform(kw, (fan_in, fan_out), jnp.float32, -bound, bound)
    b = jax.random.uniform(kb, (1, fan_out), jnp.float32, -bound, bound)
    return w, b


def reference_forward(x, w1, b1, w2, b2, w3, b3, compute_dtype=jnp.float32):
    cd = compute_dtype
    a1 = jnp.maximum(
        jnp.dot(x.astype(cd), w1.astype(cd),
                preferred_element_type=jnp.float32) + b1.reshape(1, -1), 0.0)
    a2 = jnp.maximum(
        jnp.dot(a1.astype(cd), w2.astype(cd),
                preferred_element_type=jnp.float32) + b2.reshape(1, -1), 0.0)
    logits = jnp.dot(a2.astype(cd), w3.astype(cd),
                     preferred_element_type=jnp.float32) + b3.reshape(1, -1)
    return jax.nn.softmax(logits, axis=1)


if __name__ == "__main__":
    key = jax.random.PRNGKey(0)
    k_x, k1, k2, k3 = jax.random.split(key, 4)

    B, F, H, C = 32, 784, 128, 10   # batch, MNIST features, layerSize, classes
    x = jax.random.normal(k_x, (B, F), jnp.float32)

    w1, b1 = _init_linear(k1, F, H)
    w2, b2 = _init_linear(k2, H, H)
    w3, b3 = _init_linear(k3, H, C)

    # ---- f32 path: check against the f32 JAX reference -------------------
    params_f32 = prepare_params(w1, b1, w2, b2, w3, b3, use_bf16=False)
    out_f32 = jax.block_until_ready(ml_model_forward(x, params_f32))
    ref_f32 = reference_forward(x, w1, b1, w2, b2, w3, b3, jnp.float32)
    assert out_f32.shape == (B, C)
    assert jnp.allclose(out_f32, ref_f32, atol=5e-3, rtol=1e-2), "f32 mismatch"
    assert jnp.allclose(jnp.sum(out_f32, axis=1), 1.0, atol=1e-3), "f32 rows != 1"

    # ---- bf16 path (default, MXU-rate): check against a bf16 reference ---
    params_bf16 = prepare_params(w1, b1, w2, b2, w3, b3, use_bf16=True)
    out_bf16 = jax.block_until_ready(ml_model_forward(x, params_bf16))
    ref_bf16 = reference_forward(x, w1, b1, w2, b2, w3, b3, jnp.bfloat16)
    assert out_bf16.shape == (B, C)
    assert jnp.allclose(out_bf16, ref_bf16, atol=2e-2, rtol=5e-2), "bf16 mismatch"
    assert jnp.allclose(jnp.sum(out_bf16, axis=1), 1.0, atol=5e-3), "bf16 rows != 1"

    print("KERNEL_OK")
</pallas_src>

<mosaic_0001>
module attributes {stable_mosaic.version = 11 : i64} {
  func.func @mlp_kernel(%arg0: i32, %arg1: memref<32x784xf32, #tpu.memory_space<vmem>>, %arg2: memref<784x128xf32, #tpu.memory_space<vmem>>, %arg3: memref<1x128xf32, #tpu.memory_space<vmem>>, %arg4: memref<128x128xf32, #tpu.memory_space<vmem>>, %arg5: memref<1x128xf32, #tpu.memory_space<vmem>>, %arg6: memref<128x128xf32, #tpu.memory_space<vmem>>, %arg7: memref<1x128xf32, #tpu.memory_space<vmem>>, %arg8: memref<32x128xf32, #tpu.memory_space<vmem>>) attributes {dimension_semantics = [#tpu.dimension_semantics<parallel>], iteration_bounds = array<i64: 1>, scalar_prefetch = 0 : i64, scratch_operands = 0 : i64, tpu.core_type = #tpu.core_type<tc>, window_params = [{transform_indices = @transform_0, window_bounds = array<i64: 32, 784>}, {pipeline_mode = #tpu.pipeline_mode<synchronous>, transform_indices = @transform_1, window_bounds = array<i64: 784, 128>}, {pipeline_mode = #tpu.pipeline_mode<synchronous>, transform_indices = @transform_2, window_bounds = array<i64: 1, 128>}, {pipeline_mode = #tpu.pipeline_mode<synchronous>, transform_indices = @transform_3, window_bounds = array<i64: 128, 128>}, {pipeline_mode = #tpu.pipeline_mode<synchronous>, transform_indices = @transform_4, window_bounds = array<i64: 1, 128>}, {pipeline_mode = #tpu.pipeline_mode<synchronous>, transform_indices = @transform_5, window_bounds = array<i64: 128, 128>}, {pipeline_mode = #tpu.pipeline_mode<synchronous>, transform_indices = @transform_6, window_bounds = array<i64: 1, 128>}, {transform_indices = @transform_7, window_bounds = array<i64: 32, 128>}]} {
    %c0 = arith.constant 0 : index
    %c0_0 = arith.constant 0 : index
    %0 = vector.load %arg1[%c0, %c0_0] : memref<32x784xf32, #tpu.memory_space<vmem>>, vector<32x784xf32>
    %c0_1 = arith.constant 0 : index
    %c0_2 = arith.constant 0 : index
    %1 = vector.load %arg2[%c0_1, %c0_2] : memref<784x128xf32, #tpu.memory_space<vmem>>, vector<784x128xf32>
    %cst = arith.constant dense<0.000000e+00> : vector<32x128xf32>
    %2 = tpu.matmul %0, %1, %cst {dimension_numbers = #tpu.dot_dimension_numbers<[1], [0], [0], [1], [0, 0, 1, 1], [], []>} : vector<32x784xf32>, vector<784x128xf32>, vector<32x128xf32> -> vector<32x128xf32>
    %c0_3 = arith.constant 0 : index
    %c0_4 = arith.constant 0 : index
    %3 = vector.load %arg3[%c0_3, %c0_4] : memref<1x128xf32, #tpu.memory_space<vmem>>, vector<1x128xf32>
    %4 = vector.broadcast %3 : vector<1x128xf32> to vector<32x128xf32>
    %5 = arith.addf %2, %4 : vector<32x128xf32>
    %cst_5 = arith.constant 0.000000e+00 : f32
    %6 = vector.broadcast %cst_5 : f32 to vector<32x128xf32>
    %7 = arith.maximumf %5, %6 : vector<32x128xf32>
    %c0_6 = arith.constant 0 : index
    %c0_7 = arith.constant 0 : index
    %8 = vector.load %arg4[%c0_6, %c0_7] : memref<128x128xf32, #tpu.memory_space<vmem>>, vector<128x128xf32>
    %cst_8 = arith.constant dense<0.000000e+00> : vector<32x128xf32>
    %9 = tpu.matmul %7, %8, %cst_8 {dimension_numbers = #tpu.dot_dimension_numbers<[1], [0], [0], [1], [0, 0, 1, 1], [], []>} : vector<32x128xf32>, vector<128x128xf32>, vector<32x128xf32> -> vector<32x128xf32>
    %c0_9 = arith.constant 0 : index
    %c0_10 = arith.constant 0 : index
    %10 = vector.load %arg5[%c0_9, %c0_10] : memref<1x128xf32, #tpu.memory_space<vmem>>, vector<1x128xf32>
    %11 = vector.broadcast %10 : vector<1x128xf32> to vector<32x128xf32>
    %12 = arith.addf %9, %11 : vector<32x128xf32>
    %cst_11 = arith.constant 0.000000e+00 : f32
    %13 = vector.broadcast %cst_11 : f32 to vector<32x128xf32>
    %14 = arith.maximumf %12, %13 : vector<32x128xf32>
    %c0_12 = arith.constant 0 : index
    %c0_13 = arith.constant 0 : index
    %15 = vector.load %arg6[%c0_12, %c0_13] : memref<128x128xf32, #tpu.memory_space<vmem>>, vector<128x128xf32>
    %cst_14 = arith.constant dense<0.000000e+00> : vector<32x128xf32>
    %16 = tpu.matmul %14, %15, %cst_14 {dimension_numbers = #tpu.dot_dimension_numbers<[1], [0], [0], [1], [0, 0, 1, 1], [], []>} : vector<32x128xf32>, vector<128x128xf32>, vector<32x128xf32> -> vector<32x128xf32>
    %c0_15 = arith.constant 0 : index
    %c0_16 = arith.constant 0 : index
    %17 = vector.load %arg7[%c0_15, %c0_16] : memref<1x128xf32, #tpu.memory_space<vmem>>, vector<1x128xf32>
    %18 = vector.broadcast %17 : vector<1x128xf32> to vector<32x128xf32>
    %19 = arith.addf %16, %18 : vector<32x128xf32>
    %cst_17 = arith.constant dense<0xFF800000> : vector<32xf32>
    %20 = vector.multi_reduction <maximumf>, %19, %cst_17 [1] : vector<32x128xf32> to vector<32xf32>
    %21 = vector.shape_cast %20 : vector<32xf32> to vector<32x1xf32>
    %22 = vector.broadcast %21 : vector<32x1xf32> to vector<32x128xf32>
    %23 = arith.subf %19, %22 : vector<32x128xf32>
    %24 = math.exp %23 : vector<32x128xf32>
    %cst_18 = arith.constant dense<0.000000e+00> : vector<32xf32>
    %25 = vector.multi_reduction <add>, %24, %cst_18 [1] : vector<32x128xf32> to vector<32xf32>
    %26 = vector.shape_cast %25 : vector<32xf32> to vector<32x1xf32>
    %27 = vector.broadcast %26 : vector<32x1xf32> to vector<32x128xf32>
    %28 = arith.divf %24, %27 : vector<32x128xf32>
    %c0_19 = arith.constant 0 : index
    %c0_20 = arith.constant 0 : index
    %29 = vector.load %arg8[%c0_19, %c0_20] : memref<32x128xf32, #tpu.memory_space<vmem>>, vector<32x128xf32>
    tpu.vector_store %arg8[%c0_19, %c0_20], %28 {strides = array<i32>} : memref<32x128xf32, #tpu.memory_space<vmem>>, vector<32x128xf32>,
    return
  }
  func.func @transform_0(%arg0: i32) -> (i32, i32) {
    %c0_i32 = arith.constant 0 : i32
    %c0_i32_0 = arith.constant 0 : i32
    return %arg0, %c0_i32 : i32, i32
  }
  func.func @transform_1(%arg0: i32) -> (i32, i32) {
    %c0_i32 = arith.constant 0 : i32
    %c0_i32_0 = arith.constant 0 : i32
    %c0_i32_1 = arith.constant 0 : i32
    return %c0_i32, %c0_i32_0 : i32, i32
  }
  func.func @transform_2(%arg0: i32) -> (i32, i32) {
    %c0_i32 = arith.constant 0 : i32
    %c0_i32_0 = arith.constant 0 : i32
    %c0_i32_1 = arith.constant 0 : i32
    return %c0_i32, %c0_i32_0 : i32, i32
  }
  func.func @transform_3(%arg0: i32) -> (i32, i32) {
    %c0_i32 = arith.constant 0 : i32
    %c0_i32_0 = arith.constant 0 : i32
    %c0_i32_1 = arith.constant 0 : i32
    return %c0_i32, %c0_i32_0 : i32, i32
  }
  func.func @transform_4(%arg0: i32) -> (i32, i32) {
    %c0_i32 = arith.constant 0 : i32
    %c0_i32_0 = arith.constant 0 : i32
    %c0_i32_1 = arith.constant 0 : i32
    return %c0_i32, %c0_i32_0 : i32, i32
  }
  func.func @transform_5(%arg0: i32) -> (i32, i32) {
    %c0_i32 = arith.constant 0 : i32
    %c0_i32_0 = arith.constant 0 : i32
    %c0_i32_1 = arith.constant 0 : i32
    return %c0_i32, %c0_i32_0 : i32, i32
  }
  func.func @transform_6(%arg0: i32) -> (i32, i32) {
    %c0_i32 = arith.constant 0 : i32
    %c0_i32_0 = arith.constant 0 : i32
    %c0_i32_1 = arith.constant 0 : i32
    return %c0_i32, %c0_i32_0 : i32, i32
  }
  func.func @transform_7(%arg0: i32) -> (i32, i32) {
    %c0_i32 = arith.constant 0 : i32
    %c0_i32_0 = arith.constant 0 : i32
    return %arg0, %c0_i32 : i32, i32
  }
}

</mosaic_0001>

<llo_original>
// kernel: tpu_custom_call.1
$region0: #{tpu_custom_call.1}
  #allocation0 [shape = 'u32[]', space=smem, size = 0x4, offset = 0x4, fixed_abs, tag = 'smem constant byte address 0x4 - core index']
  #allocation1 [shape = 'u32[144,128]{1,0:T(1,128)}', space=vmem, size = 0x12000, scoped, tag = 'internal scratch']
  %s0 = inlined_call_operand.hbm [shape: f32[32,784], index: 0, kind: input, shape index: {}]
  %s1 = inlined_call_operand.hbm [shape: f32[784,128], index: 1, kind: input, shape index: {}]
  %s2 = inlined_call_operand.vmem [shape: f32[1,128], index: 2, kind: input, shape index: {}]
  %s3 = inlined_call_operand.hbm [shape: f32[128,128], index: 3, kind: input, shape index: {}]
  %s4 = inlined_call_operand.vmem [shape: f32[1,128], index: 4, kind: input, shape index: {}]
  %s5 = inlined_call_operand.hbm [shape: f32[128,128], index: 5, kind: input, shape index: {}]
  %s6 = inlined_call_operand.vmem [shape: f32[1,128], index: 6, kind: input, shape index: {}]
  %s7 = inlined_call_operand.hbm [shape: f32[32,128], index: 7, kind: output, shape index: {}]
  %s8 = sld [smem:[#allocation0]]
  $region54: #{tpu_custom_call.1} parent=0
    _
  %s10 = ssub.s32 1, %s8
  %s11 = scalar_select 0, %s10, %s8
  $region1: #{tpu_custom_call.1} parent=0
    #allocation2 [shape = 'u8[114688]{0}', space=vmem, size = 0x1c000, scoped, tag = 'input window, operand 0, single buffered']
    #allocation3 [shape = 's32[1]{0}', space=sflag, size = 0x4, scoped, tag = 'scoped memory for tpu_custom_call.1']
    #allocation4 [shape = 's32[1]{0}', space=sflag, size = 0x4, scoped, tag = 'scoped memory for tpu_custom_call.1']
    #allocation5 [shape = 'u8[401408]{0}', space=vmem, size = 0x62000, scoped, tag = 'input window, operand 1, single buffered']
    #allocation6 [shape = 's32[1]{0}', space=sflag, size = 0x4, scoped, tag = 'scoped memory for tpu_custom_call.1']
    #allocation7 [shape = 'u8[65536]{0}', space=vmem, size = 0x10000, scoped, tag = 'input window, operand 3, single buffered']
    #allocation8 [shape = 'u8[65536]{0}', space=vmem, size = 0x10000, scoped, tag = 'input window, operand 5, single buffered']
    #allocation9 [shape = 's32[1]{0}', space=sflag, size = 0x4, scoped, tag = 'scoped memory for tpu_custom_call.1']
    #allocation10 [shape = 'u8[16384]{0}', space=vmem, size = 0x4000, scoped, tag = 'output window, operand 0, single buffered']
    %12 = vsyncpa [#allocation3], 0
    %13 = vsyncpa [#allocation6], 0
    %14 = vsyncpa [#allocation9], 0
    %15 = vsyncpa [#allocation4], 0
    // Predicated region
    $region2: #{tpu_custom_call.1} parent=1 // pred_check
      _
    $region3: #{tpu_custom_call.1} parent=1 // pred_check_branch
      %17 = sbr.rel (0) target = $region5
    $region4: #{tpu_custom_call.1} parent=1 // pred_region
      %s19 = ssub.s32 3584, 3584
      %20 = vsyncadd [#allocation3], %s19
      %s21 = sshll.u32 [#allocation2], 4
      %s22 = int_to_ptr.vmem [resolvable:$true] %s21
      %27 = dma.hbm_to_vmem [thread:$0]  %s0, 3584, %s22, [#allocation3], 896, 896, 56
    $region5: #{tpu_custom_call.1} parent=1 // pred_fallthru
      _
    // Predicated region
    $region6: #{tpu_custom_call.1} parent=1 // pred_check
      _
    $region7: #{tpu_custom_call.1} parent=1 // pred_check_branch
      %29 = sbr.rel (0) target = $region9
    $region8: #{tpu_custom_call.1} parent=1 // pred_region
      %s31 = ssub.s32 12544, 12544
      %32 = vsyncadd [#allocation6], %s31
      %s33 = sshll.u32 [#allocation5], 4
      %s34 = int_to_ptr.vmem [resolvable:$true] %s33
      %39 = dma.hbm_to_vmem [thread:$0]  %s1, 12544, %s34, [#allocation6], 128, 128, 8
    $region9: #{tpu_custom_call.1} parent=1 // pred_fallthru
      _
    // Predicated region
    $region10: #{tpu_custom_call.1} parent=1 // pred_check
      _
    $region11: #{tpu_custom_call.1} parent=1 // pred_check_branch
      %41 = sbr.rel (0) target = $region13
    $region12: #{tpu_custom_call.1} parent=1 // pred_region
      _
    $region13: #{tpu_custom_call.1} parent=1 // pred_fallthru
      _
    // Predicated region
    $region14: #{tpu_custom_call.1} parent=1 // pred_check
      _
    $region15: #{tpu_custom_call.1} parent=1 // pred_check_branch
      %43 = sbr.rel (0) target = $region17
    $region16: #{tpu_custom_call.1} parent=1 // pred_region
      %s45 = ssub.s32 2048, 2048
      %46 = vsyncadd [#allocation6], %s45
      %s47 = sshll.u32 [#allocation7], 4
      %s48 = int_to_ptr.vmem [resolvable:$true] %s47
      %53 = dma.hbm_to_vmem [thread:$0]  %s3, 2048, %s48, [#allocation6], 128, 128, 8
    $region17: #{tpu_custom_call.1} parent=1 // pred_fallthru
      _
    // Predicated region
    $region18: #{tpu_custom_call.1} parent=1 // pred_check
      _
    $region19: #{tpu_custom_call.1} parent=1 // pred_check_branch
      %55 = sbr.rel (0) target = $region21
    $region20: #{tpu_custom_call.1} parent=1 // pred_region
      _
    $region21: #{tpu_custom_call.1} parent=1 // pred_fallthru
      _
    // Predicated region
    $region22: #{tpu_custom_call.1} parent=1 // pred_check
      _
    $region23: #{tpu_custom_call.1} parent=1 // pred_check_branch
      %57 = sbr.rel (0) target = $region25
    $region24: #{tpu_custom_call.1} parent=1 // pred_region
      %s59 = ssub.s32 2048, 2048
      %60 = vsyncadd [#allocation9], %s59
      %s61 = sshll.u32 [#allocation8], 4
      %s62 = int_to_ptr.vmem [resolvable:$true] %s61
      %67 = dma.hbm_to_vmem [thread:$0]  %s5, 2048, %s62, [#allocation9], 128, 128, 8
    $region25: #{tpu_custom_call.1} parent=1 // pred_fallthru
      _
    // Predicated region
    $region26: #{tpu_custom_call.1} parent=1 // pred_check
      _
    $region27: #{tpu_custom_call.1} parent=1 // pred_check_branch
      %69 = sbr.rel (0) target = $region29
    $region28: #{tpu_custom_call.1} parent=1 // pred_region
      _
    $region29: #{tpu_custom_call.1} parent=1 // pred_fallthru
      _
    // Predicated region
    $region30: #{tpu_custom_call.1} parent=1 // pred_check
      _
    $region31: #{tpu_custom_call.1} parent=1 // pred_check_branch
      %71 = sbr.rel (0) target = $region33
    $region32: #{tpu_custom_call.1} parent=1 // pred_region
      %72 = dma.done [#allocation3], 3584
    $region33: #{tpu_custom_call.1} parent=1 // pred_fallthru
      _
    // Predicated region
    $region34: #{tpu_custom_call.1} parent=1 // pred_check
      _
    $region35: #{tpu_custom_call.1} parent=1 // pred_check_branch
      %74 = sbr.rel (0) target = $region37
    $region36: #{tpu_custom_call.1} parent=1 // pred_region
      %75 = dma.done [#allocation6], 12544
    $region37: #{tpu_custom_call.1} parent=1 // pred_fallthru
      _
    // Predicated region
    $region38: #{tpu_custom_call.1} parent=1 // pred_check
      _
    $region39: #{tpu_custom_call.1} parent=1 // pred_check_branch
      %77 = sbr.rel (0) target = $region41
    $region40: #{tpu_custom_call.1} parent=1 // pred_region
      %78 = dma.done [#allocation6], 2048
    $region41: #{tpu_custom_call.1} parent=1 // pred_fallthru
      _
    // Predicated region
    $region42: #{tpu_custom_call.1} parent=1 // pred_check
      _
    $region43: #{tpu_custom_call.1} parent=1 // pred_check_branch
      %80 = sbr.rel (0) target = $region45
    $region44: #{tpu_custom_call.1} parent=1 // pred_region
      %81 = dma.done [#allocation9], 2048
    $region45: #{tpu_custom_call.1} parent=1 // pred_fallthru
      _
    %v82 = vld [vmem:[#allocation2] sm:$0xff]
    %v83 = vld [vmem:[#allocation2 + $0x8] sm:$0xff]
    %v84 = vld [vmem:[#allocation2 + $0x10] sm:$0xff]
    %v85 = vld [vmem:[#allocation2 + $0x18] sm:$0xff]
    %v86 = vld [vmem:[#allocation2 + $0x20] sm:$0xff]
    %v87 = vld [vmem:[#allocation2 + $0x28] sm:$0xff]
    %v88 = vld [vmem:[#allocation2 + $0x30] sm:$0xff]
    %v89 = vld [vmem:[#allocation2 + $0x38] sm:$0xff]
    %v90 = vld [vmem:[#allocation2 + $0x40] sm:$0xff]
    %v91 = vld [vmem:[#allocation2 + $0x48] sm:$0xff]
    %v92 = vld [vmem:[#allocation2 + $0x50] sm:$0xff]
    %v93 = vld [vmem:[#allocation2 + $0x58] sm:$0xff]
    %v94 = vld [vmem:[#allocation2 + $0x60] sm:$0xff]
    %v95 = vld [vmem:[#allocation2 + $0x68] sm:$0xff]
    %v96 = vld [vmem:[#allocation2 + $0x70] sm:$0xff]
    %v97 = vld [vmem:[#allocation2 + $0x78] sm:$0xff]
    %v98 = vld [vmem:[#allocation2 + $0x80] sm:$0xff]
    %v99 = vld [vmem:[#allocation2 + $0x88] sm:$0xff]
    %v100 = vld [vmem:[#allocation2 + $0x90] sm:$0xff]
    %v101 = vld [vmem:[#allocation2 + $0x98] sm:$0xff]
    %v102 = vld [vmem:[#allocation2 + $0xa0] sm:$0xff]
    %v103 = vld [vmem:[#allocation2 + $0xa8] sm:$0xff]
    %v104 = vld [vmem:[#allocation2 + $0xb0] sm:$0xff]
    %v105 = vld [vmem:[#allocation2 + $0xb8] sm:$0xff]
    %v106 = vld [vmem:[#allocation2 + $0xc0] sm:$0xff]
    %v107 = vld [vmem:[#allocation2 + $0xc8] sm:$0xff]
    %v108 = vld [vmem:[#allocation2 + $0xd0] sm:$0xff]
    %v109 = vld [vmem:[#allocation2 + $0xd8] sm:$0xff]
    %v110 = vld [vmem:[#allocation5] sm:$0xff]
    %v111 = vld [vmem:[#allocation5 + $0x8] sm:$0xff]
    %v112 = vld [vmem:[#allocation5 + $0x10] sm:$0xff]
    %v113 = vld [vmem:[#allocation5 + $0x18] sm:$0xff]
    %v114 = vld [vmem:[#allocation5 + $0x20] sm:$0xff]
    %v115 = vld [vmem:[#allocation5 + $0x28] sm:$0xff]
    %v116 = vld [vmem:[#allocation5 + $0x30] sm:$0xff]
    %v117 = vld [vmem:[#allocation5 + $0x38] sm:$0xff]
    %v118 = vld [vmem:[#allocation5 + $0x40] sm:$0xff]
    %v119 = vld [vmem:[#allocation5 + $0x48] sm:$0xff]
    %v120 = vld [vmem:[#allocation5 + $0x50] sm:$0xff]
    %v121 = vld [vmem:[#allocation5 + $0x58] sm:$0xff]
    %v122 = vld [vmem:[#allocation5 + $0x60] sm:$0xff]
    %v123 = vld [vmem:[#allocation5 + $0x68] sm:$0xff]
    %v124 = vld [vmem:[#allocation5 + $0x70] sm:$0xff]
    %v125 = vld [vmem:[#allocation5 + $0x78] sm:$0xff]
    %v126 = vld [vmem:[#allocation5 + $0x80] sm:$0xff]
    %v127 = vld [vmem:[#allocation5 + $0x88] sm:$0xff]
    %v128 = vld [vmem:[#allocation5 + $0x90] sm:$0xff]
    %v129 = vld [vmem:[#allocation5 + $0x98] sm:$0xff]
    %v130 = vld [vmem:[#allocation5 + $0xa0] sm:$0xff]
    %v131 = vld [vmem:[#allocation5 + $0xa8] sm:$0xff]
    %v132 = vld [vmem:[#allocation5 + $0xb0] sm:$0xff]
    %v133 = vld [vmem:[#allocation5 + $0xb8] sm:$0xff]
    %v134 = vld [vmem:[#allocation5 + $0xc0] sm:$0xff]
    %v135 = vld [vmem:[#allocation5 + $0xc8] sm:$0xff]
    %v136 = vld [vmem:[#allocation5 + $0xd0] sm:$0xff]
    %v137 = vld [vmem:[#allocation5 + $0xd8] sm:$0xff]
    %v138 = vld [vmem:[#allocation5 + $0xe0] sm:$0xff]
    %v139 = vld [vmem:[#allocation5 + $0xe8] sm:$0xff]
    %v140 = vld [vmem:[#allocation5 + $0xf0] sm:$0xff]
    %v141 = vld [vmem:[#allocation5 + $0xf8] sm:$0xff]
    %v142 = vld [vmem:[#allocation5 + $0x100] sm:$0xff]
    %v143 = vld [vmem:[#allocation5 + $0x108] sm:$0xff]
    %v144 = vld [vmem:[#allocation5 + $0x110] sm:$0xff]
    %v145 = vld [vmem:[#allocation5 + $0x118] sm:$0xff]
    %v146 = vld [vmem:[#allocation5 + $0x120] sm:$0xff]
    %v147 = vld [vmem:[#allocation5 + $0x128] sm:$0xff]
    %v148 = vld [vmem:[#allocation5 + $0x130] sm:$0xff]
    %v149 = vld [vmem:[#allocation5 + $0x138] sm:$0xff]
    %v150 = vld [vmem:[#allocation5 + $0x140] sm:$0xff]
    %v151 = vld [vmem:[#allocation5 + $0x148] sm:$0xff]
    %v152 = vld [vmem:[#allocation5 + $0x150] sm:$0xff]
    %v153 = vld [vmem:[#allocation5 + $0x158] sm:$0xff]
    %v154 = vld [vmem:[#allocation5 + $0x160] sm:$0xff]
    %v155 = vld [vmem:[#allocation5 + $0x168] sm:$0xff]
    %v156 = vld [vmem:[#allocation5 + $0x170] sm:$0xff]
    %v157 = vld [vmem:[#allocation5 + $0x178] sm:$0xff]
    %v158 = vld [vmem:[#allocation5 + $0x180] sm:$0xff]
    %v159 = vld [vmem:[#allocation5 + $0x188] sm:$0xff]
    %v160 = vld [vmem:[#allocation5 + $0x190] sm:$0xff]
    %v161 = vld [vmem:[#allocation5 + $0x198] sm:$0xff]
    %v162 = vld [vmem:[#allocation5 + $0x1a0] sm:$0xff]
    %v163 = vld [vmem:[#allocation5 + $0x1a8] sm:$0xff]
    %v164 = vld [vmem:[#allocation5 + $0x1b0] sm:$0xff]
    %v165 = vld [vmem:[#allocation5 + $0x1b8] sm:$0xff]
    %v166 = vld [vmem:[#allocation5 + $0x1c0] sm:$0xff]
    %v167 = vld [vmem:[#allocation5 + $0x1c8] sm:$0xff]
    %v168 = vld [vmem:[#allocation5 + $0x1d0] sm:$0xff]
    %v169 = vld [vmem:[#allocation5 + $0x1d8] sm:$0xff]
    %v170 = vld [vmem:[#allocation5 + $0x1e0] sm:$0xff]
    %v171 = vld [vmem:[#allocation5 + $0x1e8] sm:$0xff]
    %v172 = vld [vmem:[#allocation5 + $0x1f0] sm:$0xff]
    %v173 = vld [vmem:[#allocation5 + $0x1f8] sm:$0xff]
    %v174 = vld [vmem:[#allocation5 + $0x200] sm:$0xff]
    %v175 = vld [vmem:[#allocation5 + $0x208] sm:$0xff]
    %v176 = vld [vmem:[#allocation5 + $0x210] sm:$0xff]
    %v177 = vld [vmem:[#allocation5 + $0x218] sm:$0xff]
    %v178 = vld [vmem:[#allocation5 + $0x220] sm:$0xff]
    %v179 = vld [vmem:[#allocation5 + $0x228] sm:$0xff]
    %v180 = vld [vmem:[#allocation5 + $0x230] sm:$0xff]
    %v181 = vld [vmem:[#allocation5 + $0x238] sm:$0xff]
    %v182 = vld [vmem:[#allocation5 + $0x240] sm:$0xff]
    %v183 = vld [vmem:[#allocation5 + $0x248] sm:$0xff]
    %v184 = vld [vmem:[#allocation5 + $0x250] sm:$0xff]
    %v185 = vld [vmem:[#allocation5 + $0x258] sm:$0xff]
    %v186 = vld [vmem:[#allocation5 + $0x260] sm:$0xff]
    %v187 = vld [vmem:[#allocation5 + $0x268] sm:$0xff]
    %v188 = vld [vmem:[#allocation5 + $0x270] sm:$0xff]
    %v189 = vld [vmem:[#allocation5 + $0x278] sm:$0xff]
    %v190 = vld [vmem:[#allocation5 + $0x280] sm:$0xff]
    %v191 = vld [vmem:[#allocation5 + $0x288] sm:$0xff]
    %v192 = vld [vmem:[#allocation5 + $0x290] sm:$0xff]
    %v193 = vld [vmem:[#allocation5 + $0x298] sm:$0xff]
    %v194 = vld [vmem:[#allocation5 + $0x2a0] sm:$0xff]
    %v195 = vld [vmem:[#allocation5 + $0x2a8] sm:$0xff]
    %v196 = vld [vmem:[#allocation5 + $0x2b0] sm:$0xff]
    %v197 = vld [vmem:[#allocation5 + $0x2b8] sm:$0xff]
    %v198 = vld [vmem:[#allocation5 + $0x2c0] sm:$0xff]
    %v199 = vld [vmem:[#allocation5 + $0x2c8] sm:$0xff]
    %v200 = vld [vmem:[#allocation5 + $0x2d0] sm:$0xff]
    %v201 = vld [vmem:[#allocation5 + $0x2d8] sm:$0xff]
    %v202 = vld [vmem:[#allocation5 + $0x2e0] sm:$0xff]
    %v203 = vld [vmem:[#allocation5 + $0x2e8] sm:$0xff]
    %v204 = vld [vmem:[#allocation5 + $0x2f0] sm:$0xff]
    %v205 = vld [vmem:[#allocation5 + $0x2f8] sm:$0xff]
    %v206 = vld [vmem:[#allocation5 + $0x300] sm:$0xff]
    %v207 = vld [vmem:[#allocation5 + $0x308] sm:$0xff]
    %v208 = vld [vmem:[%s2] sm:$0x1]
    %v210 = vlaneseq
    %v211 = vshrl.u32 %v210, 7
    %v212 = vsub.s32 0, %v211
    %v213 = vrot.slane %v208, %v212
    %vm215 = vcmask 130048
    %v217 = vsel %vm215, %v88, 0
    %v220 = vsel %vm215, %v95, 0
    %v223 = vsel %vm215, %v102, 0
    %v226 = vsel %vm215, %v109, 0
    %228 = vmatprep.subr.mxu0 0.0
    %229 = vmatpush1.msra.mxu0 %v110
    %230 = vmatprep.subr.mxu0 0.0
    %231 = vmatpush1.msra.mxu0 %v111
    %232 = vmatprep.subr.mxu0 0.0
    %233 = vmatpush1.msra.mxu0 %v112
    %234 = vmatprep.subr.mxu0 0.0
    %235 = vmatpush1.msra.mxu0 %v113
    %236 = vmatprep.subr.mxu0 0.0
    %237 = vmatpush1.msra.mxu0 %v114
    %238 = vmatprep.subr.mxu0 0.0
    %239 = vmatpush1.msra.mxu0 %v115
    %240 = vmatprep.subr.mxu0 0.0
    %241 = vmatpush1.msra.mxu0 %v116
    %242 = vmatprep.subr.mxu0 0.0
    %243 = vmatpush1.msra.mxu0 %v117
    %244 = vmatprep.subr.mxu0 0.0
    %245 = vmatpush1.msra.mxu0 %v118
    %246 = vmatprep.subr.mxu0 0.0
    %247 = vmatpush1.msra.mxu0 %v119
    %248 = vmatprep.subr.mxu0 0.0
    %249 = vmatpush1.msra.mxu0 %v120
    %250 = vmatprep.subr.mxu0 0.0
    %251 = vmatpush1.msra.mxu0 %v121
    %252 = vmatprep.subr.mxu0 0.0
    %253 = vmatpush1.msra.mxu0 %v122
    %254 = vmatprep.subr.mxu0 0.0
    %255 = vmatpush1.msra.mxu0 %v123
    %256 = vmatprep.subr.mxu0 0.0
    %257 = vmatpush1.msra.mxu0 %v124
    %258 = vmatprep.subr.mxu0 0.0
    %259 = vmatpush1.msra.mxu0 %v125
    %260 = vmatprep.subr.mxu0 0.0
    %261 = vmatpush1.msra.mxu0 %v126
    %262 = vmatprep.subr.mxu0 0.0
    %263 = vmatpush1.msra.mxu0 %v127
    %264 = vmatprep.subr.mxu0 0.0
    %265 = vmatpush1.msra.mxu0 %v128
    %266 = vmatprep.subr.mxu0 0.0
    %267 = vmatpush1.msra.mxu0 %v129
    %268 = vmatprep.subr.mxu0 0.0
    %269 = vmatpush1.msra.mxu0 %v130
    %270 = vmatprep.subr.mxu0 0.0
    %271 = vmatpush1.msra.mxu0 %v131
    %272 = vmatprep.subr.mxu0 0.0
    %273 = vmatpush1.msra.mxu0 %v132
    %274 = vmatprep.subr.mxu0 0.0
    %275 = vmatpush1.msra.mxu0 %v133
    %276 = vmatprep.subr.mxu0 0.0
    %277 = vmatpush1.msra.mxu0 %v134
    %278 = vmatprep.subr.mxu0 0.0
    %279 = vmatpush1.msra.mxu0 %v135
    %280 = vmatprep.subr.mxu0 0.0
    %281 = vmatpush1.msra.mxu0 %v136
    %282 = vmatprep.subr.mxu0 0.0
    %283 = vmatpush1.msra.mxu0 %v137
    %284 = vmatprep.subr.mxu0 0.0
    %285 = vmatpush1.msra.mxu0 %v138
    %286 = vmatprep.subr.mxu0 0.0
    %287 = vmatpush1.msra.mxu0 %v139
    %288 = vmatprep.subr.mxu0 0.0
    %289 = vmatpush1.msra.mxu0 %v140
    %290 = vmatprep.subr.mxu0 0.0
    %291 = vmatpush1.msra.mxu0 %v141
    %292 = vmatprep.mubr.f32.mxu0 %v83
    %293 = vmatmul.mubr.f32.gmra.mrb[0].mxu0 %v82
    %v294 = vpop.f32.mrb[0].mxu0
    %v295 = vadd.f32 %v213, %v294
    %v296 = vpop.f32.mrb[0].mxu0
    %297 = vmatprep.mubr.f32.mxu0 %v90
    %298 = vmatmul.mubr.f32.gmra.mrb[0].mxu0 %v89
    %v299 = vpop.f32.mrb[0].mxu0
    %v300 = vadd.f32 %v213, %v299
    %v301 = vpop.f32.mrb[0].mxu0
    %302 = vmatprep.mubr.f32.mxu0 %v97
    %303 = vmatmul.mubr.f32.gmra.mrb[0].mxu0 %v96
    %v304 = vpop.f32.mrb[0].mxu0
    %v305 = vadd.f32 %v213, %v304
    %v306 = vpop.f32.mrb[0].mxu0
    %307 = vmatprep.mubr.f32.mxu0 %v104
    %308 = vmatmul.mubr.f32.gmra.mrb[0].mxu0 %v103
    %v309 = vpop.f32.mrb[0].mxu0
    %v310 = vadd.f32 %v213, %v309
    %v311 = vpop.f32.mrb[0].mxu0
    %312 = vdwg.mxu0
    %313 = vmatprep.subr.mxu0 0.0
    %314 = vmatpush1.msra.mxu0 %v142
    %315 = vmatprep.subr.mxu0 0.0
    %316 = vmatpush1.msra.mxu0 %v143
    %317 = vmatprep.subr.mxu0 0.0
    %318 = vmatpush1.msra.mxu0 %v144
    %319 = vmatprep.subr.mxu0 0.0
    %320 = vmatpush1.msra.mxu0 %v145
    %321 = vmatprep.subr.mxu0 0.0
    %322 = vmatpush1.msra.mxu0 %v146
    %323 = vmatprep.subr.mxu0 0.0
    %324 = vmatpush1.msra.mxu0 %v147
    %325 = vmatprep.subr.mxu0 0.0
    %326 = vmatpush1.msra.mxu0 %v148
    %327 = vmatprep.subr.mxu0 0.0
    %328 = vmatpush1.msra.mxu0 %v149
    %329 = vmatprep.subr.mxu0 0.0
    %330 = vmatpush1.msra.mxu0 %v150
    %331 = vmatprep.subr.mxu0 0.0
    %332 = vmatpush1.msra.mxu0 %v151
    %333 = vmatprep.subr.mxu0 0.0
    %334 = vmatpush1.msra.mxu0 %v152
    %335 = vmatprep.subr.mxu0 0.0
    %336 = vmatpush1.msra.mxu0 %v153
    %337 = vmatprep.subr.mxu0 0.0
    %338 = vmatpush1.msra.mxu0 %v154
    %339 = vmatprep.subr.mxu0 0.0
    %340 = vmatpush1.msra.mxu0 %v155
    %341 = vmatprep.subr.mxu0 0.0
    %342 = vmatpush1.msra.mxu0 %v156
    %343 = vmatprep.subr.mxu0 0.0
    %344 = vmatpush1.msra.mxu0 %v157
    %345 = vmatprep.subr.mxu0 0.0
    %346 = vmatpush1.msra.mxu0 %v158
    %347 = vmatprep.subr.mxu0 0.0
    %348 = vmatpush1.msra.mxu0 %v159
    %349 = vmatprep.subr.mxu0 0.0
    %350 = vmatpush1.msra.mxu0 %v160
    %351 = vmatprep.subr.mxu0 0.0
    %352 = vmatpush1.msra.mxu0 %v161
    %353 = vmatprep.subr.mxu0 0.0
    %354 = vmatpush1.msra.mxu0 %v162
    %355 = vmatprep.subr.mxu0 0.0
    %356 = vmatpush1.msra.mxu0 %v163
    %357 = vmatprep.subr.mxu0 0.0
    %358 = vmatpush1.msra.mxu0 %v164
    %359 = vmatprep.subr.mxu0 0.0
    %360 = vmatpush1.msra.mxu0 %v165
    %361 = vmatprep.subr.mxu0 0.0
    %362 = vmatpush1.msra.mxu0 %v166
    %363 = vmatprep.subr.mxu0 0.0
    %364 = vmatpush1.msra.mxu0 %v167
    %365 = vmatprep.subr.mxu0 0.0
    %366 = vmatpush1.msra.mxu0 %v168
    %367 = vmatprep.subr.mxu0 0.0
    %368 = vmatpush1.msra.mxu0 %v169
    %369 = vmatprep.subr.mxu0 0.0
    %370 = vmatpush1.msra.mxu0 %v170
    %371 = vmatprep.subr.mxu0 0.0
    %372 = vmatpush1.msra.mxu0 %v171
    %373 = vmatprep.subr.mxu0 0.0
    %374 = vmatpush1.msra.mxu0 %v172
    %375 = vmatprep.subr.mxu0 0.0
    %376 = vmatpush1.msra.mxu0 %v173
    %377 = vmatprep.mubr.f32.mxu0 %v85
    %378 = vmatmul.mubr.f32.gmra.mrb[0].mxu0 %v84
    %v379 = vpop.f32.mrb[0].mxu0
    %v380 = vadd.f32 %v295, %v379
    %v381 = vpop.f32.mrb[0].mxu0
    %382 = vmatprep.mubr.f32.mxu0 %v92
    %383 = vmatmul.mubr.f32.gmra.mrb[0].mxu0 %v91
    %v384 = vpop.f32.mrb[0].mxu0
    %v385 = vadd.f32 %v300, %v384
    %v386 = vpop.f32.mrb[0].mxu0
    %387 = vmatprep.mubr.f32.mxu0 %v99
    %388 = vmatmul.mubr.f32.gmra.mrb[0].mxu0 %v98
    %v389 = vpop.f32.mrb[0].mxu0
    %v390 = vadd.f32 %v305, %v389
    %v391 = vpop.f32.mrb[0].mxu0
    %392 = vmatprep.mubr.f32.mxu0 %v106
    %393 = vmatmul.mubr.f32.gmra.mrb[0].mxu0 %v105
    %v394 = vpop.f32.mrb[0].mxu0
    %v395 = vadd.f32 %v310, %v394
    %v396 = vpop.f32.mrb[0].mxu0
    %397 = vdwg.mxu0
    %398 = vmatprep.subr.mxu0 0.0
    %399 = vmatpush1.msra.mxu0 %v174
    %400 = vmatprep.subr.mxu0 0.0
    %401 = vmatpush1.msra.mxu0 %v175
    %402 = vmatprep.subr.mxu0 0.0
    %403 = vmatpush1.msra.mxu0 %v176
    %404 = vmatprep.subr.mxu0 0.0
    %405 = vmatpush1.msra.mxu0 %v177
    %406 = vmatprep.subr.mxu0 0.0
    %407 = vmatpush1.msra.mxu0 %v178
    %408 = vmatprep.subr.mxu0 0.0
    %409 = vmatpush1.msra.mxu0 %v179
    %410 = vmatprep.subr.mxu0 0.0
    %411 = vmatpush1.msra.mxu0 %v180
    %412 = vmatprep.subr.mxu0 0.0
    %413 = vmatpush1.msra.mxu0 %v181
    %414 = vmatprep.subr.mxu0 0.0
    %415 = vmatpush1.msra.mxu0 %v182
    %416 = vmatprep.subr.mxu0 0.0
    %417 = vmatpush1.msra.mxu0 %v183
    %418 = vmatprep.subr.mxu0 0.0
    %419 = vmatpush1.msra.mxu0 %v184
    %420 = vmatprep.subr.mxu0 0.0
    %421 = vmatpush1.msra.mxu0 %v185
    %422 = vmatprep.subr.mxu0 0.0
    %423 = vmatpush1.msra.mxu0 %v186
    %424 = vmatprep.subr.mxu0 0.0
    %425 = vmatpush1.msra.mxu0 %v187
    %426 = vmatprep.subr.mxu0 0.0
    %427 = vmatpush1.msra.mxu0 %v188
    %428 = vmatprep.subr.mxu0 0.0
    %429 = vmatpush1.msra.mxu0 %v189
    %430 = vmatprep.subr.mxu0 0.0
    %431 = vmatpush1.msra.mxu0 %v190
    %432 = vmatprep.subr.mxu0 0.0
    %433 = vmatpush1.msra.mxu0 %v191
    %434 = vmatprep.subr.mxu0 0.0
    %435 = vmatpush1.msra.mxu0 %v192
    %436 = vmatprep.subr.mxu0 0.0
    %437 = vmatpush1.msra.mxu0 %v193
    %438 = vmatprep.subr.mxu0 0.0
    %439 = vmatpush1.msra.mxu0 %v194
    %440 = vmatprep.subr.mxu0 0.0
    %441 = vmatpush1.msra.mxu0 %v195
    %442 = vmatprep.subr.mxu0 0.0
    %443 = vmatpush1.msra.mxu0 %v196
    %444 = vmatprep.subr.mxu0 0.0
    %445 = vmatpush1.msra.mxu0 %v197
    %446 = vmatprep.subr.mxu0 0.0
    %447 = vmatpush1.msra.mxu0 %v198
    %448 = vmatprep.subr.mxu0 0.0
    %449 = vmatpush1.msra.mxu0 %v199
    %450 = vmatprep.subr.mxu0 0.0
    %451 = vmatpush1.msra.mxu0 %v200
    %452 = vmatprep.subr.mxu0 0.0
    %453 = vmatpush1.msra.mxu0 %v201
    %454 = vmatprep.subr.mxu0 0.0
    %455 = vmatpush1.msra.mxu0 %v202
    %456 = vmatprep.subr.mxu0 0.0
    %457 = vmatpush1.msra.mxu0 %v203
    %458 = vmatprep.subr.mxu0 0.0
    %459 = vmatpush1.msra.mxu0 %v204
    %460 = vmatprep.subr.mxu0 0.0
    %461 = vmatpush1.msra.mxu0 %v205
    %462 = vmatprep.mubr.f32.mxu0 %v87
    %463 = vmatmul.mubr.f32.gmra.mrb[0].mxu0 %v86
    %v464 = vpop.f32.mrb[0].mxu0
    %v465 = vadd.f32 %v380, %v464
    %v466 = vpop.f32.mrb[0].mxu0
    %467 = vmatprep.mubr.f32.mxu0 %v94
    %468 = vmatmul.mubr.f32.gmra.mrb[0].mxu0 %v93
    %v469 = vpop.f32.mrb[0].mxu0
    %v470 = vadd.f32 %v385, %v469
    %v471 = vpop.f32.mrb[0].mxu0
    %472 = vmatprep.mubr.f32.mxu0 %v101
    %473 = vmatmul.mubr.f32.gmra.mrb[0].mxu0 %v100
    %v474 = vpop.f32.mrb[0].mxu0
    %v475 = vadd.f32 %v390, %v474
    %v476 = vpop.f32.mrb[0].mxu0
    %477 = vmatprep.mubr.f32.mxu0 %v108
    %478 = vmatmul.mubr.f32.gmra.mrb[0].mxu0 %v107
    %v479 = vpop.f32.mrb[0].mxu0
    %v480 = vadd.f32 %v395, %v479
    %v481 = vpop.f32.mrb[0].mxu0
    %482 = vdwg.mxu0
    %483 = vmatprep.subr.mxu0 0.0
    %484 = vmatpush1.msra.mxu0 %v206
    %485 = vmatprep.subr.mxu0 0.0
    %486 = vmatpush1.msra.mxu0 %v207
    %487 = vmatprep.subr.mxu0 0.0
    %488 = vmatpush1.msra.mxu0 0.0
    %489 = vmatprep.subr.mxu0 0.0
    %490 = vmatpush1.msra.mxu0 0.0
    %491 = vmatprep.subr.mxu0 0.0
    %492 = vmatpush1.msra.mxu0 0.0
    %493 = vmatprep.subr.mxu0 0.0
    %494 = vmatpush1.msra.mxu0 0.0
    %495 = vmatprep.subr.mxu0 0.0
    %496 = vmatpush1.msra.mxu0 0.0
    %497 = vmatprep.subr.mxu0 0.0
    %498 = vmatpush1.msra.mxu0 0.0
    %499 = vmatprep.subr.mxu0 0.0
    %500 = vmatpush1.msra.mxu0 0.0
    %501 = vmatprep.subr.mxu0 0.0
    %502 = vmatpush1.msra.mxu0 0.0
    %503 = vmatprep.subr.mxu0 0.0
    %504 = vmatpush1.msra.mxu0 0.0
    %505 = vmatprep.subr.mxu0 0.0
    %506 = vmatpush1.msra.mxu0 0.0
    %507 = vmatprep.subr.mxu0 0.0
    %508 = vmatpush1.msra.mxu0 0.0
    %509 = vmatprep.subr.mxu0 0.0
    %510 = vmatpush1.msra.mxu0 0.0
    %511 = vmatprep.subr.mxu0 0.0
    %512 = vmatpush1.msra.mxu0 0.0
    %513 = vmatprep.subr.mxu0 0.0
    %514 = vmatpush1.msra.mxu0 0.0
    %515 = vmatprep.subr.mxu0 0.0
    %516 = vmatpush1.msra.mxu0 0.0
    %517 = vmatprep.subr.mxu0 0.0
    %518 = vmatpush1.msra.mxu0 0.0
    %519 = vmatprep.subr.mxu0 0.0
    %520 = vmatpush1.msra.mxu0 0.0
    %521 = vmatprep.subr.mxu0 0.0
    %522 = vmatpush1.msra.mxu0 0.0
    %523 = vmatprep.subr.mxu0 0.0
    %524 = vmatpush1.msra.mxu0 0.0
    %525 = vmatprep.subr.mxu0 0.0
    %526 = vmatpush1.msra.mxu0 0.0
    %527 = vmatprep.subr.mxu0 0.0
    %528 = vmatpush1.msra.mxu0 0.0
    %529 = vmatprep.subr.mxu0 0.0
    %530 = vmatpush1.msra.mxu0 0.0
    %531 = vmatprep.subr.mxu0 0.0
    %532 = vmatpush1.msra.mxu0 0.0
    %533 = vmatprep.subr.mxu0 0.0
    %534 = vmatpush1.msra.mxu0 0.0
    %535 = vmatprep.subr.mxu0 0.0
    %536 = vmatpush1.msra.mxu0 0.0
    %537 = vmatprep.subr.mxu0 0.0
    %538 = vmatpush1.msra.mxu0 0.0
    %539 = vmatprep.subr.mxu0 0.0
    %540 = vmatpush1.msra.mxu0 0.0
    %541 = vmatprep.subr.mxu0 0.0
    %542 = vmatpush1.msra.mxu0 0.0
    %543 = vmatprep.subr.mxu0 0.0
    %544 = vmatpush1.msra.mxu0 0.0
    %545 = vmatprep.subr.mxu0 0.0
    %546 = vmatpush1.msra.mxu0 0.0
    %547 = vmatprep.mubr.f32.mxu0 0.0
    %548 = vmatmul.mubr.f32.gmra.mrb[0].mxu0 %v217
    %v549 = vpop.f32.mrb[0].mxu0
    %v550 = vadd.f32 %v465, %v549
    %v551 = vpop.f32.mrb[0].mxu0
    %552 = vmatprep.mubr.f32.mxu0 0.0
    %553 = vmatmul.mubr.f32.gmra.mrb[0].mxu0 %v220
    %v554 = vpop.f32.mrb[0].mxu0
    %v555 = vadd.f32 %v470, %v554
    %v556 = vpop.f32.mrb[0].mxu0
    %557 = vmatprep.mubr.f32.mxu0 0.0
    %558 = vmatmul.mubr.f32.gmra.mrb[0].mxu0 %v223
    %v559 = vpop.f32.mrb[0].mxu0
    %v560 = vadd.f32 %v475, %v559
    %v561 = vpop.f32.mrb[0].mxu0
    %562 = vmatprep.mubr.f32.mxu0 0.0
    %563 = vmatmul.mubr.f32.gmra.mrb[0].mxu0 %v226
    %v564 = vpop.f32.mrb[0].mxu0
    %v565 = vadd.f32 %v480, %v564
    %v566 = vpop.f32.mrb[0].mxu0
    %567 = vdwg.mxu0
    %v568 = vmax.f32 %v550, 0.0
    %v569 = vmax.f32 %v555, 0.0
    %v570 = vmax.f32 %v560, 0.0
    %v571 = vmax.f32 %v565, 0.0
    %v572 = vld [vmem:[#allocation7] sm:$0xff]
    %v573 = vld [vmem:[#allocation7 + $0x8] sm:$0xff]
    %v574 = vld [vmem:[#allocation7 + $0x10] sm:$0xff]
    %v575 = vld [vmem:[#allocation7 + $0x18] sm:$0xff]
    %v576 = vld [vmem:[#allocation7 + $0x20] sm:$0xff]
    %v577 = vld [vmem:[#allocation7 + $0x28] sm:$0xff]
    %v578 = vld [vmem:[#allocation7 + $0x30] sm:$0xff]
    %v579 = vld [vmem:[#allocation7 + $0x38] sm:$0xff]
    %v580 = vld [vmem:[#allocation7 + $0x40] sm:$0xff]
    %v581 = vld [vmem:[#allocation7 + $0x48] sm:$0xff]
    %v582 = vld [vmem:[#allocation7 + $0x50] sm:$0xff]
    %v583 = vld [vmem:[#allocation7 + $0x58] sm:$0xff]
    %v584 = vld [vmem:[#allocation7 + $0x60] sm:$0xff]
    %v585 = vld [vmem:[#allocation7 + $0x68] sm:$0xff]
    %v586 = vld [vmem:[#allocation7 + $0x70] sm:$0xff]
    %v587 = vld [vmem:[#allocation7 + $0x78] sm:$0xff]
    %v588 = vld [vmem:[%s4] sm:$0x1]
    %v590 = vlaneseq
    %v591 = vshrl.u32 %v590, 7
    %v592 = vsub.s32 0, %v591
    %v593 = vrot.slane %v588, %v592
    %595 = vmatprep.subr.mxu0 0.0
    %596 = vmatpush1.msra.mxu0 %v572
    %597 = vmatprep.subr.mxu0 0.0
    %598 = vmatpush1.msra.mxu0 %v573
    %599 = vmatprep.subr.mxu0 0.0
    %600 = vmatpush1.msra.mxu0 %v574
    %601 = vmatprep.subr.mxu0 0.0
    %602 = vmatpush1.msra.mxu0 %v575
    %603 = vmatprep.subr.mxu0 0.0
    %604 = vmatpush1.msra.mxu0 %v576
    %605 = vmatprep.subr.mxu0 0.0
    %606 = vmatpush1.msra.mxu0 %v577
    %607 = vmatprep.subr.mxu0 0.0
    %608 = vmatpush1.msra.mxu0 %v578
    %609 = vmatprep.subr.mxu0 0.0
    %610 = vmatpush1.msra.mxu0 %v579
    %611 = vmatprep.subr.mxu0 0.0
    %612 = vmatpush1.msra.mxu0 %v580
    %613 = vmatprep.subr.mxu0 0.0
    %614 = vmatpush1.msra.mxu0 %v581
    %615 = vmatprep.subr.mxu0 0.0
    %616 = vmatpush1.msra.mxu0 %v582
    %617 = vmatprep.subr.mxu0 0.0
    %618 = vmatpush1.msra.mxu0 %v583
    %619 = vmatprep.subr.mxu0 0.0
    %620 = vmatpush1.msra.mxu0 %v584
    %621 = vmatprep.subr.mxu0 0.0
    %622 = vmatpush1.msra.mxu0 %v585
    %623 = vmatprep.subr.mxu0 0.0
    %624 = vmatpush1.msra.mxu0 %v586
    %625 = vmatprep.subr.mxu0 0.0
    %626 = vmatpush1.msra.mxu0 %v587
    %627 = vmatprep.subr.mxu0 0.0
    %628 = vmatpush1.msra.mxu0 0.0
    %629 = vmatprep.subr.mxu0 0.0
    %630 = vmatpush1.msra.mxu0 0.0
    %631 = vmatprep.subr.mxu0 0.0
    %632 = vmatpush1.msra.mxu0 0.0
    %633 = vmatprep.subr.mxu0 0.0
    %634 = vmatpush1.msra.mxu0 0.0
    %635 = vmatprep.subr.mxu0 0.0
    %636 = vmatpush1.msra.mxu0 0.0
    %637 = vmatprep.subr.mxu0 0.0
    %638 = vmatpush1.msra.mxu0 0.0
    %639 = vmatprep.subr.mxu0 0.0
    %640 = vmatpush1.msra.mxu0 0.0
    %641 = vmatprep.subr.mxu0 0.0
    %642 = vmatpush1.msra.mxu0 0.0
    %643 = vmatprep.subr.mxu0 0.0
    %644 = vmatpush1.msra.mxu0 0.0
    %645 = vmatprep.subr.mxu0 0.0
    %646 = vmatpush1.msra.mxu0 0.0
    %647 = vmatprep.subr.mxu0 0.0
    %648 = vmatpush1.msra.mxu0 0.0
    %649 = vmatprep.subr.mxu0 0.0
    %650 = vmatpush1.msra.mxu0 0.0
    %651 = vmatprep.subr.mxu0 0.0
    %652 = vmatpush1.msra.mxu0 0.0
    %653 = vmatprep.subr.mxu0 0.0
    %654 = vmatpush1.msra.mxu0 0.0
    %655 = vmatprep.subr.mxu0 0.0
    %656 = vmatpush1.msra.mxu0 0.0
    %657 = vmatprep.subr.mxu0 0.0
    %658 = vmatpush1.msra.mxu0 0.0
    %659 = vmatprep.mubr.f32.mxu0 0.0
    %660 = vmatmul.mubr.f32.gmra.mrb[0].mxu0 %v568
    %v661 = vpop.f32.mrb[0].mxu0
    %v662 = vadd.f32 %v593, %v661
    %v663 = vpop.f32.mrb[0].mxu0
    %664 = vmatprep.mubr.f32.mxu0 0.0
    %665 = vmatmul.mubr.f32.gmra.mrb[0].mxu0 %v569
    %v666 = vpop.f32.mrb[0].mxu0
    %v667 = vadd.f32 %v593, %v666
    %v668 = vpop.f32.mrb[0].mxu0
    %669 = vmatprep.mubr.f32.mxu0 0.0
    %670 = vmatmul.mubr.f32.gmra.mrb[0].mxu0 %v570
    %v671 = vpop.f32.mrb[0].mxu0
    %v672 = vadd.f32 %v593, %v671
    %v673 = vpop.f32.mrb[0].mxu0
    %674 = vmatprep.mubr.f32.mxu0 0.0
    %675 = vmatmul.mubr.f32.gmra.mrb[0].mxu0 %v571
    %v676 = vpop.f32.mrb[0].mxu0
    %v677 = vadd.f32 %v593, %v676
    %v678 = vpop.f32.mrb[0].mxu0
    %679 = vdwg.mxu0
    %v680 = vmax.f32 %v662, 0.0
    %v681 = vmax.f32 %v667, 0.0
    %v682 = vmax.f32 %v672, 0.0
    %v683 = vmax.f32 %v677, 0.0
    %v684 = vld [vmem:[#allocation8] sm:$0xff]
    %v685 = vld [vmem:[#allocation8 + $0x8] sm:$0xff]
    %v686 = vld [vmem:[#allocation8 + $0x10] sm:$0xff]
    %v687 = vld [vmem:[#allocation8 + $0x18] sm:$0xff]
    %v688 = vld [vmem:[#allocation8 + $0x20] sm:$0xff]
    %v689 = vld [vmem:[#allocation8 + $0x28] sm:$0xff]
    %v690 = vld [vmem:[#allocation8 + $0x30] sm:$0xff]
    %v691 = vld [vmem:[#allocation8 + $0x38] sm:$0xff]
    %v692 = vld [vmem:[#allocation8 + $0x40] sm:$0xff]
    %v693 = vld [vmem:[#allocation8 + $0x48] sm:$0xff]
    %v694 = vld [vmem:[#allocation8 + $0x50] sm:$0xff]
    %v695 = vld [vmem:[#allocation8 + $0x58] sm:$0xff]
    %v696 = vld [vmem:[#allocation8 + $0x60] sm:$0xff]
    %v697 = vld [vmem:[#allocation8 + $0x68] sm:$0xff]
    %v698 = vld [vmem:[#allocation8 + $0x70] sm:$0xff]
    %v699 = vld [vmem:[#allocation8 + $0x78] sm:$0xff]
    %v700 = vld [vmem:[%s6] sm:$0x1]
    %v702 = vlaneseq
    %v703 = vshrl.u32 %v702, 7
    %v704 = vsub.s32 0, %v703
    %v705 = vrot.slane %v700, %v704
    %707 = vmatprep.subr.mxu0 0.0
    %708 = vmatpush1.msra.mxu0 %v684
    %709 = vmatprep.subr.mxu0 0.0
    %710 = vmatpush1.msra.mxu0 %v685
    %711 = vmatprep.subr.mxu0 0.0
    %712 = vmatpush1.msra.mxu0 %v686
    %713 = vmatprep.subr.mxu0 0.0
    %714 = vmatpush1.msra.mxu0 %v687
    %715 = vmatprep.subr.mxu0 0.0
    %716 = vmatpush1.msra.mxu0 %v688
    %717 = vmatprep.subr.mxu0 0.0
    %718 = vmatpush1.msra.mxu0 %v689
    %719 = vmatprep.subr.mxu0 0.0
    %720 = vmatpush1.msra.mxu0 %v690
    %721 = vmatprep.subr.mxu0 0.0
    %722 = vmatpush1.msra.mxu0 %v691
    %723 = vmatprep.subr.mxu0 0.0
    %724 = vmatpush1.msra.mxu0 %v692
    %725 = vmatprep.subr.mxu0 0.0
    %726 = vmatpush1.msra.mxu0 %v693
    %727 = vmatprep.subr.mxu0 0.0
    %728 = vmatpush1.msra.mxu0 %v694
    %729 = vmatprep.subr.mxu0 0.0
    %730 = vmatpush1.msra.mxu0 %v695
    %731 = vmatprep.subr.mxu0 0.0
    %732 = vmatpush1.msra.mxu0 %v696
    %733 = vmatprep.subr.mxu0 0.0
    %734 = vmatpush1.msra.mxu0 %v697
    %735 = vmatprep.subr.mxu0 0.0
    %736 = vmatpush1.msra.mxu0 %v698
    %737 = vmatprep.subr.mxu0 0.0
    %738 = vmatpush1.msra.mxu0 %v699
    %739 = vmatprep.subr.mxu0 0.0
    %740 = vmatpush1.msra.mxu0 0.0
    %741 = vmatprep.subr.mxu0 0.0
    %742 = vmatpush1.msra.mxu0 0.0
    %743 = vmatprep.subr.mxu0 0.0
    %744 = vmatpush1.msra.mxu0 0.0
    %745 = vmatprep.subr.mxu0 0.0
    %746 = vmatpush1.msra.mxu0 0.0
    %747 = vmatprep.subr.mxu0 0.0
    %748 = vmatpush1.msra.mxu0 0.0
    %749 = vmatprep.subr.mxu0 0.0
    %750 = vmatpush1.msra.mxu0 0.0
    %751 = vmatprep.subr.mxu0 0.0
    %752 = vmatpush1.msra.mxu0 0.0
    %753 = vmatprep.subr.mxu0 0.0
    %754 = vmatpush1.msra.mxu0 0.0
    %755 = vmatprep.subr.mxu0 0.0
    %756 = vmatpush1.msra.mxu0 0.0
    %757 = vmatprep.subr.mxu0 0.0
    %758 = vmatpush1.msra.mxu0 0.0
    %759 = vmatprep.subr.mxu0 0.0
    %760 = vmatpush1.msra.mxu0 0.0
    %761 = vmatprep.subr.mxu0 0.0
    %762 = vmatpush1.msra.mxu0 0.0
    %763 = vmatprep.subr.mxu0 0.0
    %764 = vmatpush1.msra.mxu0 0.0
    %765 = vmatprep.subr.mxu0 0.0
    %766 = vmatpush1.msra.mxu0 0.0
    %767 = vmatprep.subr.mxu0 0.0
    %768 = vmatpush1.msra.mxu0 0.0
    %769 = vmatprep.subr.mxu0 0.0
    %770 = vmatpush1.msra.mxu0 0.0
    %771 = vmatprep.mubr.f32.mxu0 0.0
    %772 = vmatmul.mubr.f32.gmra.mrb[0].mxu0 %v680
    %v773 = vpop.f32.mrb[0].mxu0
    %v774 = vadd.f32 %v705, %v773
    %v775 = vpop.f32.mrb[0].mxu0
    %776 = vmatprep.mubr.f32.mxu0 0.0
    %777 = vmatmul.mubr.f32.gmra.mrb[0].mxu0 %v681
    %v778 = vpop.f32.mrb[0].mxu0
    %v779 = vadd.f32 %v705, %v778
    %v780 = vpop.f32.mrb[0].mxu0
    %781 = vmatprep.mubr.f32.mxu0 0.0
    %782 = vmatmul.mubr.f32.gmra.mrb[0].mxu0 %v682
    %v783 = vpop.f32.mrb[0].mxu0
    %v784 = vadd.f32 %v705, %v783
    %v785 = vpop.f32.mrb[0].mxu0
    %786 = vmatprep.mubr.f32.mxu0 0.0
    %787 = vmatmul.mubr.f32.gmra.mrb[0].mxu0 %v683
    %v788 = vpop.f32.mrb[0].mxu0
    %v789 = vadd.f32 %v705, %v788
    %v790 = vpop.f32.mrb[0].mxu0
    %791 = vdwg.mxu0
    %792 = vmax.xlane.f32.xlu0 %v774
    %v793 = vpop.xlane.xlu0 %792
    %794 = vmax.xlane.f32.xlu0 %v779
    %v795 = vpop.xlane.xlu0 %794
    %796 = vmax.xlane.f32.xlu0 %v784
    %v797 = vpop.xlane.xlu0 %796
    %798 = vmax.xlane.f32.xlu0 %v789
    %v799 = vpop.xlane.xlu0 %798
    %v800 = vsub.f32 %v774, %v793
    %v801 = vsub.f32 %v779, %v795
    %v802 = vsub.f32 %v784, %v797
    %v803 = vsub.f32 %v789, %v799
    %v804 = vmul.f32 %v800, 1.442695
    %v805 = vpow.pop %v804
    %v806 = vmul.f32 %v801, 1.442695
    %v807 = vpow.pop %v806
    %v808 = vmul.f32 %v802, 1.442695
    %v809 = vpow.pop %v808
    %v810 = vmul.f32 %v803, 1.442695
    %v811 = vpow.pop %v810
    %812 = vadd.xlane.f32.xlu0 %v805
    %v813 = vpop.xlane.xlu0 %812
    %814 = vadd.xlane.f32.xlu0 %v807
    %v815 = vpop.xlane.xlu0 %814
    %816 = vadd.xlane.f32.xlu0 %v809
    %v817 = vpop.xlane.xlu0 %816
    %818 = vadd.xlane.f32.xlu0 %v811
    %v819 = vpop.xlane.xlu0 %818
    %v820 = vrcp.pop %v813
    %v821 = vmul.f32 %v805, %v820
    %v822 = vrcp.pop %v815
    %v823 = vmul.f32 %v807, %v822
    %v824 = vrcp.pop %v817
    %v825 = vmul.f32 %v809, %v824
    %v826 = vrcp.pop %v819
    %v827 = vmul.f32 %v811, %v826
    %828 = vst [vmem:[#allocation10] sm:$0xff] %v821
    %829 = vst [vmem:[#allocation10 + $0x8] sm:$0xff] %v823
    %830 = vst [vmem:[#allocation10 + $0x10] sm:$0xff] %v825
    %831 = vst [vmem:[#allocation10 + $0x18] sm:$0xff] %v827
    // Predicated region
    $region46: #{tpu_custom_call.1} parent=1 // pred_check
      _
    $region47: #{tpu_custom_call.1} parent=1 // pred_check_branch
      %833 = sbr.rel (0) target = $region49
    $region48: #{tpu_custom_call.1} parent=1 // pred_region
      %s835 = ssub.s32 512, 512
      %836 = vsyncadd [#allocation4], %s835
      %s837 = sshll.u32 [#allocation10], 4
      %s838 = int_to_ptr.vmem [resolvable:$true] %s837
      %843 = dma.vmem_to_hbm [thread:$0]  %s838, 512, %s7, [#allocation4], 128, 128, 8
    $region49: #{tpu_custom_call.1} parent=1 // pred_fallthru
      _
    // Predicated region
    $region50: #{tpu_custom_call.1} parent=1 // pred_check
      _
    $region51: #{tpu_custom_call.1} parent=1 // pred_check_branch
      %845 = sbr.rel (0) target = $region53
    $region52: #{tpu_custom_call.1} parent=1 // pred_region
      %846 = dma.done [#allocation4], 512
    $region53: #{tpu_custom_call.1} parent=1 // pred_fallthru
      _
    %847 = vsyncpa [#allocation3], 1
    %848 = vsyncpa [#allocation6], 1
    %849 = vsyncpa [#allocation9], 1
    %850 = vsyncpa [#allocation4], 1

</llo_original>
